<compile_context>
chip_gen: v7x
topology: tpu7x:2x2x1
jax: 0.10.0
libtpu: 0.0.40
codegen_flags: <defaults>
</compile_context>

<pallas_src>
import jax
import jax.numpy as jnp
from jax.experimental import pallas as pl
from jax.experimental.pallas import tpu as pltpu


def _round_up(x, m):
    return (x + m - 1) // m * m


def _choose_tm(M, Cin, Cp, in_itemsize, out_itemsize):
    """Rows per grid step.

    Constraints: multiple of 8 (sublane); at least 2 grid steps (even count
    preferred) so the "parallel" M axis shards across v7x's two TensorCores;
    per-step double-buffered x + out tiles within a ~36 MiB budget; cap 2048.
    """
    bytes_per_row = 2 * (Cin * in_itemsize + Cp * out_itemsize)   # 2x = dbl-buffer
    budget = 36 * 1024 * 1024
    cap = min(2048, max(64, budget // max(bytes_per_row, 1)))
    cap = max(8, (cap // 8) * 8)
    steps = max(2, pl.cdiv(M, cap))
    if steps % 2:                      # even step count -> balanced megacore split
        steps += 1
    return max(8, _round_up(pl.cdiv(M, steps), 8))


def fcu_up_kernel(x_ref, w_ref, shift_ref, o_ref):
    # x_ref:     (TM, Cin)   tile of tokens (channels-last, lanes = Cin)
    # w_ref:     (Cin, Cp)   1x1-conv weight with BN scale pre-folded, Cp % 128 == 0
    # shift_ref: (1, Cp)     folded bias: (conv_b - mean) * scale + beta   (f32)
    # o_ref:     (TM, Cp)    lane-dense output tile
    y = jnp.dot(x_ref[...], w_ref[...], preferred_element_type=jnp.float32)  # MXU
    y = y + shift_ref[...]                                 # folded BN shift (f32)
    o_ref[...] = jnp.maximum(y, 0.0).astype(o_ref.dtype)   # ReLU + cast


def fold_fcu_up_params(conv_w, conv_b, bn_gamma, bn_beta, bn_mean, bn_var,
                       *, eps=1e-6, param_dtype=jnp.float32):
    """Fold conv bias + eval-mode BN into a scaled weight and a per-channel shift.

    Call once per weight update (not per forward).  Returns (w_p, shift_p, Cout):
    w_p is (Cin, Cp) with Cp = Cout rounded up to a multiple of 128 lanes,
    shift_p is (1, Cp) float32.
    """
    Cout, Cin = conv_w.shape[0], conv_w.shape[1]
    scale = bn_gamma.astype(jnp.float32) / jnp.sqrt(bn_var.astype(jnp.float32) + eps)
    w_t = conv_w.reshape(Cout, Cin).T.astype(jnp.float32) * scale[None, :]   # (Cin, Cout)
    shift = (conv_b.astype(jnp.float32) - bn_mean.astype(jnp.float32)) * scale \
        + bn_beta.astype(jnp.float32)                                        # (Cout,)
    Cp = _round_up(max(Cout, 128), 128)
    w_p = jnp.zeros((Cin, Cp), jnp.float32).at[:, :Cout].set(w_t).astype(param_dtype)
    shift_p = jnp.zeros((1, Cp), jnp.float32).at[0, :Cout].set(shift)
    return w_p, shift_p, Cout


def fcu_up_apply(x, w_p, shift_p, Cout, H, W, up_stride, *,
                 compute_dtype=None, output_layout="NCHW", upsample=True):
    """x: (B, N, Cin), N == H*W, with pre-folded (w_p, shift_p) from
    fold_fcu_up_params.  Returns (B, Cout, H*up, W*up) by default (PyTorch
    semantics); output_layout="NHWC" / upsample=False are cheaper variants for
    consumers that accept them."""
    B, N, Cin = x.shape
    assert N == H * W
    io_dtype = x.dtype                        # output follows the caller's dtype
    mm_dtype = compute_dtype if compute_dtype is not None else io_dtype
    assert w_p.shape[0] == Cin
    Cp = w_p.shape[1]

    # Collapse (B, N) -> M token rows.  Free reshape (contiguous); no padding —
    # the ragged last grid block is masked by Pallas and its rows are never
    # reduced across, so the un-DMA'd tail is harmless.
    M = B * N
    x2 = x.reshape(M, Cin).astype(mm_dtype)   # astype is a no-op unless opted in
    w_mm = w_p.astype(mm_dtype)

    in_sz = jnp.dtype(mm_dtype).itemsize
    out_sz = jnp.dtype(io_dtype).itemsize
    TM = _choose_tm(M, Cin, Cp, in_sz, out_sz)
    grid = (pl.cdiv(M, TM),)

    cost = pl.CostEstimate(
        flops=2 * M * Cin * Cp,
        transcendentals=0,
        bytes_accessed=M * Cin * in_sz + Cin * Cp * in_sz + Cp * 4 + M * Cp * out_sz,
    )

    y = pl.pallas_call(
        fcu_up_kernel,
        out_shape=jax.ShapeDtypeStruct((M, Cp), io_dtype),
        grid_spec=pltpu.PrefetchScalarGridSpec(
            num_scalar_prefetch=0,
            grid=grid,
            in_specs=[
                pl.BlockSpec((TM, Cin), lambda i: (i, 0)),
                # TODO(synk): pipeline_mode=pl.Buffered(1) on the two constant
                # operands would save one redundant weight buffer; skipped since
                # VMEM is far from the limit at these tile sizes.
                pl.BlockSpec((Cin, Cp), lambda i: (0, 0)),
                pl.BlockSpec((1, Cp), lambda i: (0, 0)),
            ],
            out_specs=pl.BlockSpec((TM, Cp), lambda i: (i, 0)),
        ),
        compiler_params=pltpu.CompilerParams(
            dimension_semantics=("parallel",),      # shards M-tiles across 2 TCs
            vmem_limit_bytes=48 * 1024 * 1024,      # v5e scoped default is 16 MiB
        ),
        cost_estimate=cost,
    )(x2, w_mm, shift_p)

    # ---- epilogue: layout + nearest-neighbour upsample (pure data movement) ----
    up = up_stride
    y = y[:, :Cout].reshape(B, H, W, Cout)
    if output_layout == "NHWC":
        if upsample and up > 1:
            y = jnp.broadcast_to(y[:, :, None, :, None, :], (B, H, up, W, up, Cout))
            y = y.reshape(B, H * up, W * up, Cout)
        return y
    # NCHW (PyTorch semantics): transpose first so the XLU-heavy transpose moves
    # up^2x fewer bytes, then replicate (single fused copy in XLA).
    y = jnp.transpose(y, (0, 3, 1, 2))                      # (B, Cout, H, W)
    if upsample and up > 1:
        y = jnp.broadcast_to(y[:, :, :, None, :, None], (B, Cout, H, up, W, up))
        y = y.reshape(B, Cout, H * up, W * up)
    return y


def fcu_up(x, conv_w, conv_b, bn_gamma, bn_beta, bn_mean, bn_var,
           H, W, up_stride, *, eps=1e-6, compute_dtype=None,
           output_layout="NCHW", upsample=True):
    """Convenience wrapper: fold + apply in one call (folding is per-call here;
    prefer fold_fcu_up_params + fcu_up_apply in steady-state inference)."""
    mm_dtype = compute_dtype if compute_dtype is not None else x.dtype
    w_p, shift_p, Cout = fold_fcu_up_params(
        conv_w, conv_b, bn_gamma, bn_beta, bn_mean, bn_var,
        eps=eps, param_dtype=mm_dtype)
    return fcu_up_apply(x, w_p, shift_p, Cout, H, W, up_stride,
                        compute_dtype=compute_dtype,
                        output_layout=output_layout, upsample=upsample)


def _fcu_up_ref(x, conv_w, conv_b, g, b, mean, var, H, W, up, eps=1e-6):
    """Pure-JAX reference mirroring the PyTorch module (eval-mode BN)."""
    B, N, Cin = x.shape
    Cout = conv_w.shape[0]
    xr = jnp.transpose(x, (0, 2, 1)).reshape(B, Cin, H, W)
    y = jnp.einsum('bchw,oc->bohw', xr, conv_w.reshape(Cout, Cin)) \
        + conv_b[None, :, None, None]
    y = (y - mean[None, :, None, None]) / jnp.sqrt(var[None, :, None, None] + eps)
    y = y * g[None, :, None, None] + b[None, :, None, None]
    y = jnp.maximum(y, 0.0)
    y = jnp.repeat(jnp.repeat(y, up, axis=2), up, axis=3)
    return y


if __name__ == "__main__":
    # Small deterministic setup consistent with the module:
    #   inplanes=32, outplanes=16, up_stride=2, B=2, H=W=8 -> N = 64 tokens,
    #   M = 128 rows -> grid of 2 tiles (both TCs busy on v7x).
    B, H, W = 2, 8, 8
    inplanes, outplanes, up_stride = 32, 16, 2
    N = H * W

    key = jax.random.PRNGKey(0)
    k_x, k_w, k_b, k_g, k_beta = jax.random.split(key, 5)

    x = jax.random.normal(k_x, (B, N, inplanes), dtype=jnp.float32)
    conv_w = jax.random.normal(k_w, (outplanes, inplanes, 1, 1), dtype=jnp.float32) * 0.1
    conv_b = jax.random.normal(k_b, (outplanes,), dtype=jnp.float32) * 0.1
    bn_gamma = 1.0 + 0.1 * jax.random.normal(k_g, (outplanes,), dtype=jnp.float32)
    bn_beta = 0.1 * jax.random.normal(k_beta, (outplanes,), dtype=jnp.float32)
    bn_mean = jnp.zeros((outplanes,), dtype=jnp.float32)   # fresh BN running stats
    bn_var = jnp.ones((outplanes,), dtype=jnp.float32)

    # Fold once (hoisted out of the forward path), then apply.
    w_p, shift_p, Cout = fold_fcu_up_params(
        conv_w, conv_b, bn_gamma, bn_beta, bn_mean, bn_var, eps=1e-6)
    out = fcu_up_apply(x, w_p, shift_p, Cout, H, W, up_stride)
    out = jax.block_until_ready(out)

    assert out.shape == (B, outplanes, H * up_stride, W * up_stride), out.shape
    assert bool(jnp.all(out >= 0.0))  # ReLU

    ref = _fcu_up_ref(x, conv_w, conv_b, bn_gamma, bn_beta, bn_mean, bn_var,
                      H, W, up_stride)
    assert bool(jnp.allclose(out, ref, rtol=1e-4, atol=1e-4)), \
        float(jnp.max(jnp.abs(out - ref)))

    # Cheaper NHWC variant (no cross-lane transpose) must match the same math.
    out_nhwc = jax.block_until_ready(
        fcu_up(x, conv_w, conv_b, bn_gamma, bn_beta, bn_mean, bn_var,
               H, W, up_stride, output_layout="NHWC"))
    assert bool(jnp.allclose(jnp.transpose(out_nhwc, (0, 3, 1, 2)), ref,
                             rtol=1e-4, atol=1e-4))

    print("KERNEL_OK")
</pallas_src>

<mosaic_0001>
module attributes {stable_mosaic.version = 11 : i64} {
  func.func @fcu_up_kernel(%arg0: i32, %arg1: memref<64x32xf32, #tpu.memory_space<vmem>>, %arg2: memref<32x128xf32, #tpu.memory_space<vmem>>, %arg3: memref<1x128xf32, #tpu.memory_space<vmem>>, %arg4: memref<64x128xf32, #tpu.memory_space<vmem>>) attributes {dimension_semantics = [#tpu.dimension_semantics<parallel>], iteration_bounds = array<i64: 2>, scalar_prefetch = 0 : i64, scratch_operands = 0 : i64, tpu.core_type = #tpu.core_type<tc>, window_params = [{transform_indices = @transform_0, window_bounds = array<i64: 64, 32>}, {pipeline_mode = #tpu.pipeline_mode<synchronous>, transform_indices = @transform_1, window_bounds = array<i64: 32, 128>}, {pipeline_mode = #tpu.pipeline_mode<synchronous>, transform_indices = @transform_2, window_bounds = array<i64: 1, 128>}, {transform_indices = @transform_3, window_bounds = array<i64: 64, 128>}]} {
    %c0 = arith.constant 0 : index
    %c0_0 = arith.constant 0 : index
    %0 = vector.load %arg1[%c0, %c0_0] : memref<64x32xf32, #tpu.memory_space<vmem>>, vector<64x32xf32>
    %c0_1 = arith.constant 0 : index
    %c0_2 = arith.constant 0 : index
    %1 = vector.load %arg2[%c0_1, %c0_2] : memref<32x128xf32, #tpu.memory_space<vmem>>, vector<32x128xf32>
    %cst = arith.constant dense<0.000000e+00> : vector<64x128xf32>
    %2 = tpu.matmul %0, %1, %cst {dimension_numbers = #tpu.dot_dimension_numbers<[1], [0], [0], [1], [0, 0, 1, 1], [], []>} : vector<64x32xf32>, vector<32x128xf32>, vector<64x128xf32> -> vector<64x128xf32>
    %c0_3 = arith.constant 0 : index
    %c0_4 = arith.constant 0 : index
    %3 = vector.load %arg3[%c0_3, %c0_4] : memref<1x128xf32, #tpu.memory_space<vmem>>, vector<1x128xf32>
    %4 = vector.broadcast %3 : vector<1x128xf32> to vector<64x128xf32>
    %5 = arith.addf %2, %4 : vector<64x128xf32>
    %cst_5 = arith.constant 0.000000e+00 : f32
    %6 = vector.broadcast %cst_5 : f32 to vector<64x128xf32>
    %7 = arith.maximumf %5, %6 : vector<64x128xf32>
    %c0_6 = arith.constant 0 : index
    %c0_7 = arith.constant 0 : index
    %8 = vector.load %arg4[%c0_6, %c0_7] : memref<64x128xf32, #tpu.memory_space<vmem>>, vector<64x128xf32>
    tpu.vector_store %arg4[%c0_6, %c0_7], %7 {strides = array<i32>} : memref<64x128xf32, #tpu.memory_space<vmem>>, vector<64x128xf32>,
    return
  }
  func.func @transform_0(%arg0: i32) -> (i32, i32) {
    %c0_i32 = arith.constant 0 : i32
    %c0_i32_0 = arith.constant 0 : i32
    return %arg0, %c0_i32 : i32, i32
  }
  func.func @transform_1(%arg0: i32) -> (i32, i32) {
    %c0_i32 = arith.constant 0 : i32
    %c0_i32_0 = arith.constant 0 : i32
    %c0_i32_1 = arith.constant 0 : i32
    return %c0_i32, %c0_i32_0 : i32, i32
  }
  func.func @transform_2(%arg0: i32) -> (i32, i32) {
    %c0_i32 = arith.constant 0 : i32
    %c0_i32_0 = arith.constant 0 : i32
    %c0_i32_1 = arith.constant 0 : i32
    return %c0_i32, %c0_i32_0 : i32, i32
  }
  func.func @transform_3(%arg0: i32) -> (i32, i32) {
    %c0_i32 = arith.constant 0 : i32
    %c0_i32_0 = arith.constant 0 : i32
    return %arg0, %c0_i32 : i32, i32
  }
}

</mosaic_0001>

<llo_original>
// kernel: tpu_custom_call.1
$region0: #{tpu_custom_call.1}
  #allocation0 [shape = 'u32[]', space=smem, size = 0x4, offset = 0x4, fixed_abs, tag = 'smem constant byte address 0x4 - core index']
  #allocation1 [shape = 'u32[144,128]{1,0:T(1,128)}', space=vmem, size = 0x12000, scoped, tag = 'internal scratch']
  %s0 = inlined_call_operand.vmem [shape: f32[128,32], index: 0, kind: input, shape index: {}]
  %s1 = inlined_call_operand.vmem [shape: f32[32,128], index: 1, kind: input, shape index: {}]
  %s2 = inlined_call_operand.vmem [shape: f32[1,128], index: 2, kind: input, shape index: {}]
  %s3 = inlined_call_operand.hbm [shape: f32[128,128], index: 3, kind: output, shape index: {}]
  %s4 = sld [smem:[#allocation0]]
  $region45: #{tpu_custom_call.1} parent=0
    _
  %s6 = ssub.s32 1, %s4
  %s7 = scalar_select 0, %s6, %s4
  $region1: #{tpu_custom_call.1} parent=0
    #allocation2 [shape = 'u8[65536]{0}', space=vmem, size = 0x10000, scoped, tag = 'output window, operand 0']
    #allocation3 [shape = 's32[2]{0}', space=sflag, size = 0x8, scoped, tag = 'scoped memory for tpu_custom_call.1']
    %8 = vsyncpa [#allocation3], 0
    %s9 = scalar_lea.sflag [#allocation3], 1
    %10 = vsyncpa %s9, 0
    loop: start=0, step=1, limit=4
    $region2: #{tpu_custom_call.1} parent=1 // loop_pre_header
      _
    $region3: #{tpu_custom_call.1} parent=1 // loop_header
      %s12 = sphi 0, %s16
      %p13 = scmp.ge.s32.totalorder %s12, 4
      %s22 = sphi 0, %s24
      %s25 = sphi 0, %s22
      %s26 = sphi 0, %s25
      %s42 = sphi 0, %s26
      %s46 = sphi 0, %s46
      %s48 = sphi 0, %s46
      %s49 = sphi 0, %s48
      %s63 = sphi 0, %s49
      %s67 = sphi 0, %s67
      %s69 = sphi 0, %s67
      %s70 = sphi 0, %s69
      %s84 = sphi 0, %s70
      %s90 = sphi 0, %s92
      %s93 = sphi 0, %s90
      %s94 = sphi 0, %s93
      %s110 = sphi 0, %s94
    $region4: #{tpu_custom_call.1} parent=1 // loop_header_branch
      %15 = sbr.rel (%p13) target = $region8
    $region5: #{tpu_custom_call.1} parent=1 // loop_body
      %s17 = ssub.s32 %s12, 1
      %s18 = ssub.s32 %s12, 2
      %s19 = sadd.s32 %s12, 1
      %s20 = ssub.s32 %s12, %s19
      %p21 = scmp.eq.s32.totalorder %s20, 0
      %s23 = sadd.s32 %s22, 1
      %s24 = scalar_select %p21, %s22, %s23
      %p27 = pneg %p21
      %p28 = scmp.eq.s32.totalorder %s12, 1
      %p29 = por %p27, %p28
      %p30 = scmp.ne.s32.totalorder %s22, %s25
      %p31 = scmp.eq.s32.totalorder %s12, 0
      %p32 = por %p30, %p31
      %p33 = scmp.ne.s32.totalorder %s22, %s25
      %p34 = scmp.eq.s32.totalorder %s17, 1
      %p35 = por %p33, %p34
      %p36 = scmp.ne.s32.totalorder %s25, %s26
      %p37 = scmp.eq.s32.totalorder %s17, 0
      %p38 = por %p36, %p37
      %p39 = scmp.ne.s32.totalorder %s25, %s26
      %p40 = scmp.eq.s32.totalorder %s18, 1
      %p41 = por %p39, %p40
      %p43 = scmp.ne.s32.totalorder %s26, %s42
      %p44 = scmp.eq.s32.totalorder %s18, 0
      %p45 = por %p43, %p44
      %s47 = sadd.s32 %s46, 1
      %p50 = scmp.eq.s32.totalorder %s12, 1
      %p51 = scmp.ne.s32.totalorder %s46, %s48
      %p52 = scmp.eq.s32.totalorder %s12, 0
      %p53 = por %p51, %p52
      %p54 = scmp.ne.s32.totalorder %s46, %s48
      %p55 = scmp.eq.s32.totalorder %s17, 1
      %p56 = por %p54, %p55
      %p57 = scmp.ne.s32.totalorder %s48, %s49
      %p58 = scmp.eq.s32.totalorder %s17, 0
      %p59 = por %p57, %p58
      %p60 = scmp.ne.s32.totalorder %s48, %s49
      %p61 = scmp.eq.s32.totalorder %s18, 1
      %p62 = por %p60, %p61
      %p64 = scmp.ne.s32.totalorder %s49, %s63
      %p65 = scmp.eq.s32.totalorder %s18, 0
      %p66 = por %p64, %p65
      %s68 = sadd.s32 %s67, 1
      %p71 = scmp.eq.s32.totalorder %s12, 1
      %p72 = scmp.ne.s32.totalorder %s67, %s69
      %p73 = scmp.eq.s32.totalorder %s12, 0
      %p74 = por %p72, %p73
      %p75 = scmp.ne.s32.totalorder %s67, %s69
      %p76 = scmp.eq.s32.totalorder %s17, 1
      %p77 = por %p75, %p76
      %p78 = scmp.ne.s32.totalorder %s69, %s70
      %p79 = scmp.eq.s32.totalorder %s17, 0
      %p80 = por %p78, %p79
      %p81 = scmp.ne.s32.totalorder %s69, %s70
      %p82 = scmp.eq.s32.totalorder %s18, 1
      %p83 = por %p81, %p82
      %p85 = scmp.ne.s32.totalorder %s70, %s84
      %p86 = scmp.eq.s32.totalorder %s18, 0
      %p87 = por %p85, %p86
      %s88 = ssub.s32 %s12, %s19
      %p89 = scmp.eq.s32.totalorder %s88, 0
      %s91 = sadd.s32 %s90, 1
      %s92 = scalar_select %p89, %s90, %s91
      %p95 = pneg %p89
      %p96 = scmp.eq.s32.totalorder %s12, 1
      %p97 = por %p95, %p96
      %p98 = scmp.ne.s32.totalorder %s90, %s93
      %p99 = scmp.eq.s32.totalorder %s12, 0
      %p100 = por %p98, %p99
      %p101 = scmp.ne.s32.totalorder %s90, %s93
      %p102 = scmp.eq.s32.totalorder %s17, 1
      %p103 = por %p101, %p102
      %p104 = scmp.ne.s32.totalorder %s93, %s94
      %p105 = scmp.eq.s32.totalorder %s17, 0
      %p106 = por %p104, %p105
      %p107 = scmp.ne.s32.totalorder %s93, %s94
      %p108 = scmp.eq.s32.totalorder %s18, 1
      %p109 = por %p107, %p108
      %p111 = scmp.ne.s32.totalorder %s94, %s110
      %p112 = scmp.eq.s32.totalorder %s18, 0
      %p113 = por %p111, %p112
      %p114 = scmp.le.s32.totalorder 1, %s12
      %p115 = scmp.lt.s32.totalorder %s12, 3
      %p116 = pnand %p114, %p115
      %p117 = pneg %p116
      // Predicated region
      $region9: #{tpu_custom_call.1} parent=5 // pred_check
        _
      $region10: #{tpu_custom_call.1} parent=5 // pred_check_branch
        %119 = sbr.rel (%p116) target = $region12
      $region11: #{tpu_custom_call.1} parent=5 // pred_region
        %s120 = ssub.s32 %s12, 1
        // Predicated region
        $region13: #{tpu_custom_call.1} parent=11 // pred_check
          %p121 = pneg %p59
        $region14: #{tpu_custom_call.1} parent=11 // pred_check_branch
          %123 = sbr.rel (%p121) target = $region16
        $region15: #{tpu_custom_call.1} parent=11 // pred_region
          _
        $region16: #{tpu_custom_call.1} parent=11 // pred_fallthru
          _
        // Predicated region
        $region17: #{tpu_custom_call.1} parent=11 // pred_check
          %p124 = pneg %p80
        $region18: #{tpu_custom_call.1} parent=11 // pred_check_branch
          %126 = sbr.rel (%p124) target = $region20
        $region19: #{tpu_custom_call.1} parent=11 // pred_region
          _
        $region20: #{tpu_custom_call.1} parent=11 // pred_fallthru
          _
      $region12: #{tpu_custom_call.1} parent=5 // pred_fallthru
        _
      %p127 = scmp.lt.s32.totalorder %s12, 2
      // Predicated region
      $region21: #{tpu_custom_call.1} parent=5 // pred_check
        %p128 = pneg %p127
      $region22: #{tpu_custom_call.1} parent=5 // pred_check_branch
        %130 = sbr.rel (%p128) target = $region24
      $region23: #{tpu_custom_call.1} parent=5 // pred_region
        // Predicated region
        $region25: #{tpu_custom_call.1} parent=23 // pred_check
          %p131 = pneg %p32
        $region26: #{tpu_custom_call.1} parent=23 // pred_check_branch
          %133 = sbr.rel (%p131) target = $region28
        $region27: #{tpu_custom_call.1} parent=23 // pred_region
          %s134 = smul.u32 8, %s12
          %p135 = scmp.lt.s32.totalorder %s134, 15
          %s136 = scalar_select %p135, %s134, 15
          %s137 = smul.addr %s136, 8
          %s138 = scalar_lea.vmem %s0, %s137
          %s139 = smul.u32 8, %s12
        $region28: #{tpu_custom_call.1} parent=23 // pred_fallthru
          _
      $region24: #{tpu_custom_call.1} parent=5 // pred_fallthru
        _
      %p140 = scmp.le.s32.totalorder 1, %s12
      %p141 = scmp.lt.s32.totalorder %s12, 3
      %p142 = pnand %p140, %p141
      %p143 = pneg %p142
      // Predicated region
      $region29: #{tpu_custom_call.1} parent=5 // pred_check
        _
      $region30: #{tpu_custom_call.1} parent=5 // pred_check_branch
        %145 = sbr.rel (%p142) target = $region32
      $region31: #{tpu_custom_call.1} parent=5 // pred_region
        %s146 = ssub.s32 %s12, 1
        %s147 = smul.u32 8, %s17
        %p148 = scmp.lt.s32.totalorder %s147, 15
        %s149 = scalar_select %p148, %s147, 15
        %s150 = smul.addr %s149, 8
        %s151 = scalar_lea.vmem %s0, %s150
        %p152 = pneg %p38
        %p153 = pneg %p35
        %p154 = pneg %p59
        %p155 = pneg %p56
        %p156 = pneg %p80
        %p157 = pneg %p77
        %p158 = pneg %p106
        %p159 = pneg %p103
        %s160 = sand.u32 %s93, 1
        %s161 = scalar_lea.sflag [#allocation3], %s160
        %s162 = sand.u32 %s93, 1
        %s163 = smul.addr %s162, 64
        %s164 = scalar_lea.vmem [#allocation2], %s163
        %s165 = smul.u32 8, %s17
        %p166 = scmp.lt.s32.totalorder %s165, 15
        %s167 = scalar_select %p166, %s165, 15
        %s168 = smul.addr %s167, 8
        %s169 = scalar_lea.vmem %s0, %s168
        %s170 = smul.u32 8, %s17
        %s171 = smul.u32 8, %s17
        %v172 = vld [vmem:[%s169] sm:$0xff]
        %v173 = vld [vmem:[%s169 + $0x8] sm:$0xff]
        %v174 = vld [vmem:[%s169 + $0x10] sm:$0xff]
        %v175 = vld [vmem:[%s169 + $0x18] sm:$0xff]
        %v176 = vld [vmem:[%s169 + $0x20] sm:$0xff]
        %v177 = vld [vmem:[%s169 + $0x28] sm:$0xff]
        %v178 = vld [vmem:[%s169 + $0x30] sm:$0xff]
        %v179 = vld [vmem:[%s169 + $0x38] sm:$0xff]
        %v180 = vld [vmem:[%s1] sm:$0xff]
        %v181 = vld [vmem:[%s1 + $0x8] sm:$0xff]
        %v182 = vld [vmem:[%s1 + $0x10] sm:$0xff]
        %v183 = vld [vmem:[%s1 + $0x18] sm:$0xff]
        %v184 = vld [vmem:[%s2] sm:$0x1]
        %v186 = vlaneseq
        %v187 = vshrl.u32 %v186, 7
        %v188 = vsub.s32 0, %v187
        %v189 = vrot.slane %v184, %v188
        %vm191 = vcmask 261120
        %v193 = vsel %vm191, %v172, 0
        %v196 = vsel %vm191, %v173, 0
        %v199 = vsel %vm191, %v174, 0
        %v202 = vsel %vm191, %v175, 0
        %v205 = vsel %vm191, %v176, 0
        %v208 = vsel %vm191, %v177, 0
        %v211 = vsel %vm191, %v178, 0
        %v214 = vsel %vm191, %v179, 0
        %216 = vmatprep.subr.mxu0 0.0
        %217 = vmatpush1.msra.mxu0 %v180
        %218 = vmatprep.subr.mxu0 0.0
        %219 = vmatpush1.msra.mxu0 %v181
        %220 = vmatprep.subr.mxu0 0.0
        %221 = vmatpush1.msra.mxu0 %v182
        %222 = vmatprep.subr.mxu0 0.0
        %223 = vmatpush1.msra.mxu0 %v183
        %224 = vmatprep.subr.mxu0 0.0
        %225 = vmatpush1.msra.mxu0 0.0
        %226 = vmatprep.subr.mxu0 0.0
        %227 = vmatpush1.msra.mxu0 0.0
        %228 = vmatprep.subr.mxu0 0.0
        %229 = vmatpush1.msra.mxu0 0.0
        %230 = vmatprep.subr.mxu0 0.0
        %231 = vmatpush1.msra.mxu0 0.0
        %232 = vmatprep.subr.mxu0 0.0
        %233 = vmatpush1.msra.mxu0 0.0
        %234 = vmatprep.subr.mxu0 0.0
        %235 = vmatpush1.msra.mxu0 0.0
        %236 = vmatprep.subr.mxu0 0.0
        %237 = vmatpush1.msra.mxu0 0.0
        %238 = vmatprep.subr.mxu0 0.0
        %239 = vmatpush1.msra.mxu0 0.0
        %240 = vmatprep.subr.mxu0 0.0
        %241 = vmatpush1.msra.mxu0 0.0
        %242 = vmatprep.subr.mxu0 0.0
        %243 = vmatpush1.msra.mxu0 0.0
        %244 = vmatprep.subr.mxu0 0.0
        %245 = vmatpush1.msra.mxu0 0.0
        %246 = vmatprep.subr.mxu0 0.0
        %247 = vmatpush1.msra.mxu0 0.0
        %248 = vmatprep.subr.mxu0 0.0
        %249 = vmatpush1.msra.mxu0 0.0
        %250 = vmatprep.subr.mxu0 0.0
        %251 = vmatpush1.msra.mxu0 0.0
        %252 = vmatprep.subr.mxu0 0.0
        %253 = vmatpush1.msra.mxu0 0.0
        %254 = vmatprep.subr.mxu0 0.0
        %255 = vmatpush1.msra.mxu0 0.0
        %256 = vmatprep.subr.mxu0 0.0
        %257 = vmatpush1.msra.mxu0 0.0
        %258 = vmatprep.subr.mxu0 0.0
        %259 = vmatpush1.msra.mxu0 0.0
        %260 = vmatprep.subr.mxu0 0.0
        %261 = vmatpush1.msra.mxu0 0.0
        %262 = vmatprep.subr.mxu0 0.0
        %263 = vmatpush1.msra.mxu0 0.0
        %264 = vmatprep.subr.mxu0 0.0
        %265 = vmatpush1.msra.mxu0 0.0
        %266 = vmatprep.subr.mxu0 0.0
        %267 = vmatpush1.msra.mxu0 0.0
        %268 = vmatprep.subr.mxu0 0.0
        %269 = vmatpush1.msra.mxu0 0.0
        %270 = vmatprep.subr.mxu0 0.0
        %271 = vmatpush1.msra.mxu0 0.0
        %272 = vmatprep.subr.mxu0 0.0
        %273 = vmatpush1.msra.mxu0 0.0
        %274 = vmatprep.subr.mxu0 0.0
        %275 = vmatpush1.msra.mxu0 0.0
        %276 = vmatprep.subr.mxu0 0.0
        %277 = vmatpush1.msra.mxu0 0.0
        %278 = vmatprep.subr.mxu0 0.0
        %279 = vmatpush1.msra.mxu0 0.0
        %280 = vmatprep.mubr.f32.mxu0 0.0
        %281 = vmatmul.mubr.f32.gmra.mrb[0].mxu0 %v193
        %v282 = vpop.f32.mrb[0].mxu0
        %v283 = vadd.f32 %v189, %v282
        %v284 = vpop.f32.mrb[0].mxu0
        %285 = vmatprep.mubr.f32.mxu0 0.0
        %286 = vmatmul.mubr.f32.gmra.mrb[0].mxu0 %v196
        %v287 = vpop.f32.mrb[0].mxu0
        %v288 = vadd.f32 %v189, %v287
        %v289 = vpop.f32.mrb[0].mxu0
        %290 = vmatprep.mubr.f32.mxu0 0.0
        %291 = vmatmul.mubr.f32.gmra.mrb[0].mxu0 %v199
        %v292 = vpop.f32.mrb[0].mxu0
        %v293 = vadd.f32 %v189, %v292
        %v294 = vpop.f32.mrb[0].mxu0
        %295 = vmatprep.mubr.f32.mxu0 0.0
        %296 = vmatmul.mubr.f32.gmra.mrb[0].mxu0 %v202
        %v297 = vpop.f32.mrb[0].mxu0
        %v298 = vadd.f32 %v189, %v297
        %v299 = vpop.f32.mrb[0].mxu0
        %300 = vmatprep.mubr.f32.mxu0 0.0
        %301 = vmatmul.mubr.f32.gmra.mrb[0].mxu0 %v205
        %v302 = vpop.f32.mrb[0].mxu0
        %v303 = vadd.f32 %v189, %v302
        %v304 = vpop.f32.mrb[0].mxu0
        %305 = vmatprep.mubr.f32.mxu0 0.0
        %306 = vmatmul.mubr.f32.gmra.mrb[0].mxu0 %v208
        %v307 = vpop.f32.mrb[0].mxu0
        %v308 = vadd.f32 %v189, %v307
        %v309 = vpop.f32.mrb[0].mxu0
        %310 = vmatprep.mubr.f32.mxu0 0.0
        %311 = vmatmul.mubr.f32.gmra.mrb[0].mxu0 %v211
        %v312 = vpop.f32.mrb[0].mxu0
        %v313 = vadd.f32 %v189, %v312
        %v314 = vpop.f32.mrb[0].mxu0
        %315 = vmatprep.mubr.f32.mxu0 0.0
        %316 = vmatmul.mubr.f32.gmra.mrb[0].mxu0 %v214
        %v317 = vpop.f32.mrb[0].mxu0
        %v318 = vadd.f32 %v189, %v317
        %v319 = vpop.f32.mrb[0].mxu0
        %320 = vdwg.mxu0
        %v321 = vmax.f32 %v283, 0.0
        %v322 = vmax.f32 %v288, 0.0
        %v323 = vmax.f32 %v293, 0.0
        %v324 = vmax.f32 %v298, 0.0
        %v325 = vmax.f32 %v303, 0.0
        %v326 = vmax.f32 %v308, 0.0
        %v327 = vmax.f32 %v313, 0.0
        %v328 = vmax.f32 %v318, 0.0
        %329 = vst [vmem:[%s164] sm:$0xff] %v321
        %330 = vst [vmem:[%s164 + $0x8] sm:$0xff] %v322
        %331 = vst [vmem:[%s164 + $0x10] sm:$0xff] %v323
        %332 = vst [vmem:[%s164 + $0x18] sm:$0xff] %v324
        %333 = vst [vmem:[%s164 + $0x20] sm:$0xff] %v325
        %334 = vst [vmem:[%s164 + $0x28] sm:$0xff] %v326
        %335 = vst [vmem:[%s164 + $0x30] sm:$0xff] %v327
        %336 = vst [vmem:[%s164 + $0x38] sm:$0xff] %v328
        %s337 = sand.u32 %s93, 1
        %s338 = scalar_lea.sflag [#allocation3], %s337
        %s339 = sand.u32 %s93, 1
        %s340 = smul.addr %s339, 64
        %s341 = scalar_lea.vmem [#allocation2], %s340
        // Predicated region
        $region33: #{tpu_custom_call.1} parent=31 // pred_check
          %p342 = pneg %p103
        $region34: #{tpu_custom_call.1} parent=31 // pred_check_branch
          %344 = sbr.rel (%p342) target = $region36
        $region35: #{tpu_custom_call.1} parent=31 // pred_region
          %s345 = smul.u32 8, %s17
          %s347 = ssub.s32 1024, 1024
          %348 = vsyncadd %s338, %s347
          %s349 = smul.addr %s345, 128
          %s350 = scalar_lea.hbm %s3, %s349
          %s351 = sshll.u32 %s341, 4
          %s352 = int_to_ptr.vmem [resolvable:$true] %s351
          %357 = dma.vmem_to_hbm [thread:$0]  %s352, 1024, %s350, %s338, 128, 128, 8
        $region36: #{tpu_custom_call.1} parent=31 // pred_fallthru
          _
      $region32: #{tpu_custom_call.1} parent=5 // pred_fallthru
        _
      %p358 = scmp.le.s32.totalorder 2, %s12
      // Predicated region
      $region37: #{tpu_custom_call.1} parent=5 // pred_check
        %p359 = pneg %p358
      $region38: #{tpu_custom_call.1} parent=5 // pred_check_branch
        %361 = sbr.rel (%p359) target = $region40
      $region39: #{tpu_custom_call.1} parent=5 // pred_region
        %s362 = ssub.s32 %s12, 2
        // Predicated region
        $region41: #{tpu_custom_call.1} parent=39 // pred_check
          %p363 = pneg %p109
        $region42: #{tpu_custom_call.1} parent=39 // pred_check_branch
          %365 = sbr.rel (%p363) target = $region44
        $region43: #{tpu_custom_call.1} parent=39 // pred_region
          %s366 = sand.u32 %s94, 1
          %s367 = scalar_lea.sflag [#allocation3], %s366
          %s368 = sand.u32 %s94, 1
          %s369 = smul.addr %s368, 64
          %s370 = scalar_lea.vmem [#allocation2], %s369
          %371 = dma.done %s367, 1024
        $region44: #{tpu_custom_call.1} parent=39 // pred_fallthru
          _
      $region40: #{tpu_custom_call.1} parent=5 // pred_fallthru
        _
    $region6: #{tpu_custom_call.1} parent=1 // loop_footer
      %s16 = sadd.s32 1, %s12
    $region7: #{tpu_custom_call.1} parent=1 // loop_footer_branch
      %11 = sbr.rel target = $region3
    $region8: #{tpu_custom_call.1} parent=1 // loop_exit
      _
    %372 = vsyncpa [#allocation3], 1
    %s373 = scalar_lea.sflag [#allocation3], 1
    %374 = vsyncpa %s373, 1

</llo_original>
